<compile_context>
chip_gen: v7x
topology: tpu7x:2x2x1
jax: 0.10.0
libtpu: 0.0.40
codegen_flags: <defaults>
</compile_context>

<pallas_src>
import jax
import jax.numpy as jnp
from jax import lax
from jax.experimental import pallas as pl
from jax.experimental.pallas import tpu as pltpu
import numpy as np

_EPS = 1e-8
_SENTINEL = 1.0e6   # far-away coordinate for padded points (never the nearest)
_GT_CHUNK = 256     # ground-truth lanes processed per inner strip


def _chamfer_kernel(pred_ref, gt_ref, fwd_ref, bwd_ref, fwd_acc, bwd_acc, rhs_buf):
    i = pl.program_id(2)                 # pred-tile index within this chunk
    ni = pl.num_programs(2)

    p = pred_ref[0]                      # (3, tp)
    tp = p.shape[1]
    ng = gt_ref.shape[2]
    n_strips = ng // _GT_CHUNK

    # rhs = [1 ; g ; g^2] built once per (batch, chunk): the gt block (and hence
    # rhs_buf / bwd_acc) is constant / accumulated across the pred-tile axis.
    @pl.when(i == 0)
    def _():
        g = gt_ref[0]                                              # (3, ng)
        g2 = jnp.sum(g * g, axis=0, keepdims=True)                 # (1, ng)
        rhs_buf[...] = jnp.concatenate(
            [jnp.ones_like(g2), g, g2], axis=0)                    # (5, ng)
        bwd_acc[...] = jnp.full((8, ng), jnp.inf, dtype=jnp.float32)

    # lhs = [p^2 ; -2p ; 1] built once per pred tile (outside the strip loop).
    p2 = jnp.sum(p * p, axis=0, keepdims=True)                     # (1, tp)
    lhs = jnp.concatenate([p2, -2.0 * p, jnp.ones_like(p2)], axis=0)   # (5, tp)

    # Forward accumulator: lane-group partial mins over all gt strips.
    fwd_acc[...] = jnp.full((tp, 128), jnp.inf, dtype=jnp.float32)

    @pl.loop(0, n_strips)
    def _(s):
        start = pl.multiple_of(s * _GT_CHUNK, _GT_CHUNK)
        sl = pl.ds(start, _GT_CHUNK)
        rhs = rhs_buf[:, sl]                                       # (5, chunk)

        # d[a, b] = ||p_a||^2 + ||g_b||^2 - 2 p_a . g_b, entirely on the MXU.
        d = lax.dot_general(lhs, rhs, (((0,), (0,)), ((), ())),
                            preferred_element_type=jnp.float32)    # (tp, chunk)

        # Forward partial: fold the strip's 128-lane groups (VPU only).
        m = d[:, 0:128]
        for c in range(1, _GT_CHUNK // 128):
            m = jnp.minimum(m, d[:, c * 128:(c + 1) * 128])
        fwd_acc[...] = jnp.minimum(fwd_acc[...], m)

        # Backward partial: fold the tile's 8-row sublane groups (VPU only).
        col = d[0:8, :]
        for r in range(1, tp // 8):
            col = jnp.minimum(col, d[8 * r:8 * (r + 1), :])
        bwd_acc[:, sl] = jnp.minimum(bwd_acc[:, sl], col)

    # Forward finalize (once per pred tile): lane reduce + transpose + robust().
    row_min = jnp.maximum(jnp.min(fwd_acc[...], axis=1, keepdims=True), 0.0)
    fwd_ref[0, :, :] = jnp.sqrt(jnp.transpose(row_min) + _EPS)     # (1, tp)

    # Backward finalize (once per batch/chunk): the output block is resident
    # across the pred-tile axis, so it is written back to HBM exactly once.
    @pl.when(i == ni - 1)
    def _():
        mins = jnp.maximum(jnp.min(bwd_acc[...], axis=0, keepdims=True), 0.0)
        bwd_ref[0, :, :] = jnp.sqrt(mins + _EPS)                   # (1, ng)


def _round_up(x, m):
    return ((x + m - 1) // m) * m


def _pad_points(x, n_pad):
    n = x.shape[2]
    if n_pad == n:
        return x
    return jnp.pad(x, ((0, 0), (0, 0), (0, n_pad - n)), constant_values=_SENTINEL)


def chamfer_loss(predict_pc, gt_pc, *, tile_p=1024, pred_chunks=None):
    """predict_pc: (B, 3, Np) f32, gt_pc: (B, 3, Ng) f32 -> scalar Chamfer loss."""
    predict_pc = predict_pc.astype(jnp.float32)
    gt_pc = gt_pc.astype(jnp.float32)
    B, C, Np = predict_pc.shape
    Bg, Cg, Ng = gt_pc.shape
    assert C == 3 and Cg == 3 and B == Bg

    # Pred tile: largest needed multiple of 128, capped at tile_p.
    tp_cap = max(128, (int(tile_p) // 128) * 128)
    tp = min(tp_cap, _round_up(Np, 128))

    # Pred-tile core split (feeds v7x's two TensorCores when B is small / odd).
    if pred_chunks is None:
        pred_chunks = 2 if (B % 2 == 1 and _round_up(Np, tp) >= 2 * tp) else 1
    pred_chunks = max(1, int(pred_chunks))

    # Pad with far-away sentinels up to whole tiles / strips (never shrink the
    # tile for awkward point counts).
    np_pad = _round_up(Np, tp * pred_chunks)
    ng_pad = _round_up(Ng, _GT_CHUNK)
    ni_per = np_pad // (tp * pred_chunks)

    pred = _pad_points(predict_pc, np_pad)
    gt = _pad_points(gt_pc, ng_pad)

    grid = (B, pred_chunks, ni_per)

    # Rough VMEM budget: resident gt (double buffered) + rhs / bwd scratch +
    # one (tp, chunk) distance strip with spill headroom + I/O blocks.
    vmem_bytes = (2 * 3 * ng_pad * 4 + 8 * ng_pad * 4 + 8 * ng_pad * 4
                  + 2 * ng_pad * 4 + 2 * 4 * tp * 4
                  + tp * 128 * 4 + 2 * tp * _GT_CHUNK * 4 + (4 << 20))
    vmem_limit = min(100 << 20, max(32 << 20, int(vmem_bytes)))

    fwd, bwd = pl.pallas_call(
        _chamfer_kernel,
        out_shape=(jax.ShapeDtypeStruct((B, 1, np_pad), jnp.float32),
                   jax.ShapeDtypeStruct((B * pred_chunks, 1, ng_pad), jnp.float32)),
        grid_spec=pltpu.PrefetchScalarGridSpec(
            num_scalar_prefetch=0,
            grid=grid,
            in_specs=[
                pl.BlockSpec((1, C, tp), lambda b, c, i: (b, 0, c * ni_per + i)),
                pl.BlockSpec((1, C, ng_pad), lambda b, c, i: (b, 0, 0)),
            ],
            out_specs=[
                pl.BlockSpec((1, 1, tp), lambda b, c, i: (b, 0, c * ni_per + i)),
                pl.BlockSpec((1, 1, ng_pad),
                             lambda b, c, i: (b * pred_chunks + c, 0, 0)),
            ],
            scratch_shapes=[
                pltpu.VMEM((tp, 128), jnp.float32),    # forward lane-group mins
                pltpu.VMEM((8, ng_pad), jnp.float32),  # backward sublane-group mins
                pltpu.VMEM((5, ng_pad), jnp.float32),  # rhs = [1 ; g ; g^2]
            ],
        ),
        compiler_params=pltpu.CompilerParams(
            # The gt sweep is internal and the backward reduction runs only over
            # the innermost (pred-tile) axis, so batch and chunk axes are fully
            # independent and can be split across TensorCores.
            dimension_semantics=("parallel", "parallel", "arbitrary"),
            vmem_limit_bytes=vmem_limit,
        ),
    )(pred, gt)

    # Mask sentinel-padded entries out of the means; combine per-chunk partial
    # backward mins.
    forward_loss = fwd[:, 0, :Np].mean()
    bwd_min = jnp.min(bwd.reshape(B, pred_chunks, ng_pad), axis=1)
    backward_loss = bwd_min[:, :Ng].mean()
    return forward_loss + backward_loss


def _reference_chamfer(predict_pc, gt_pc):
    """Pure-numpy brute-force reference (mirrors faiss NN + robust())."""
    p = np.asarray(predict_pc, dtype=np.float64)   # (B, 3, Np)
    g = np.asarray(gt_pc, dtype=np.float64)        # (B, 3, Ng)
    fwd_elems, bwd_elems = [], []
    for b in range(p.shape[0]):
        pb = p[b].T  # (Np, 3)
        gb = g[b].T  # (Ng, 3)
        d = ((pb[:, None, :] - gb[None, :, :]) ** 2).sum(-1)  # (Np, Ng)
        nn_g = gb[d.argmin(axis=1)]   # selected_gt_by_predict
        nn_p = pb[d.argmin(axis=0)]   # selected_predict_by_gt
        fwd_elems.append(np.sqrt(((nn_g - pb) ** 2).sum(-1) + 1e-8))
        bwd_elems.append(np.sqrt(((nn_p - gb) ** 2).sum(-1) + 1e-8))
    return np.mean(np.stack(fwd_elems)) + np.mean(np.stack(bwd_elems))


if __name__ == "__main__":
    key = jax.random.PRNGKey(0)
    k1, k2, k3, k4 = jax.random.split(key, 4)

    # Case 1: B=2, non-lane-multiple point counts -> sentinel padding, several
    # pred tiles (backward accumulation over i) and 2 internal gt strips.
    B, Np, Ng = 2, 300, 300
    predict_pc = jax.random.normal(k1, (B, 3, Np), dtype=jnp.float32)
    gt_pc = jax.random.normal(k2, (B, 3, Ng), dtype=jnp.float32)
    ref = _reference_chamfer(predict_pc, gt_pc)

    loss_tiled = jax.block_until_ready(chamfer_loss(predict_pc, gt_pc, tile_p=128))
    assert np.allclose(float(loss_tiled), ref, rtol=1e-4, atol=1e-4), (float(loss_tiled), ref)

    loss_big = jax.block_until_ready(chamfer_loss(predict_pc, gt_pc))  # single pred tile
    assert np.allclose(float(loss_big), ref, rtol=1e-4, atol=1e-4), (float(loss_big), ref)

    # Case 2: B=1 exercises the pred-tile core-split path (pred_chunks=2) with
    # the per-chunk partial backward mins combined in the wrapper.
    B, Np, Ng = 1, 256, 192
    predict_pc = jax.random.normal(k3, (B, 3, Np), dtype=jnp.float32)
    gt_pc = jax.random.normal(k4, (B, 3, Ng), dtype=jnp.float32)
    ref = _reference_chamfer(predict_pc, gt_pc)

    loss_split = jax.block_until_ready(chamfer_loss(predict_pc, gt_pc, tile_p=128))
    assert np.allclose(float(loss_split), ref, rtol=1e-4, atol=1e-4), (float(loss_split), ref)

    print("KERNEL_OK")
</pallas_src>

<mosaic_0001>
module attributes {stable_mosaic.version = 11 : i64} {
  func.func @_chamfer_kernel(%arg0: i32, %arg1: i32, %arg2: i32, %arg3: memref<1x3x128xf32, #tpu.memory_space<vmem>>, %arg4: memref<1x3x512xf32, #tpu.memory_space<vmem>>, %arg5: memref<1x1x128xf32, #tpu.memory_space<vmem>>, %arg6: memref<1x1x512xf32, #tpu.memory_space<vmem>>, %arg7: memref<128x128xf32, #tpu.memory_space<vmem>>, %arg8: memref<8x512xf32, #tpu.memory_space<vmem>>, %arg9: memref<5x512xf32, #tpu.memory_space<vmem>>) attributes {dimension_semantics = [#tpu.dimension_semantics<parallel>, #tpu.dimension_semantics<parallel>, #tpu.dimension_semantics<arbitrary>], iteration_bounds = array<i64: 2, 1, 3>, scalar_prefetch = 0 : i64, scratch_operands = 3 : i64, tpu.core_type = #tpu.core_type<tc>, window_params = [{transform_indices = @transform_0, window_bounds = array<i64: 1, 3, 128>}, {transform_indices = @transform_1, window_bounds = array<i64: 1, 3, 512>}, {transform_indices = @transform_2, window_bounds = array<i64: 1, 1, 128>}, {transform_indices = @transform_3, window_bounds = array<i64: 1, 1, 512>}]} {
    %c0 = arith.constant 0 : index
    %c0_0 = arith.constant 0 : index
    %c0_1 = arith.constant 0 : index
    %0 = vector.load %arg3[%c0, %c0_0, %c0_1] : memref<1x3x128xf32, #tpu.memory_space<vmem>>, vector<1x3x128xf32>
    %1 = vector.shape_cast %0 : vector<1x3x128xf32> to vector<3x128xf32>
    %c0_i32 = arith.constant 0 : i32
    %2 = arith.cmpi eq, %arg2, %c0_i32 : i32
    %3 = arith.extui %2 : i1 to i32
    %c0_i32_2 = arith.constant 0 : i32
    %4 = arith.cmpi ne, %3, %c0_i32_2 : i32
    scf.if %4 {
      %c0_20 = arith.constant 0 : index
      %c0_21 = arith.constant 0 : index
      %c0_22 = arith.constant 0 : index
      %30 = vector.load %arg4[%c0_20, %c0_21, %c0_22] : memref<1x3x512xf32, #tpu.memory_space<vmem>>, vector<1x3x512xf32>
      %31 = vector.shape_cast %30 : vector<1x3x512xf32> to vector<3x512xf32>
      %32 = arith.mulf %31, %31 : vector<3x512xf32>
      %cst_23 = arith.constant dense<0.000000e+00> : vector<512xf32>
      %33 = vector.multi_reduction <add>, %32, %cst_23 [0] : vector<3x512xf32> to vector<512xf32>
      %34 = vector.shape_cast %33 : vector<512xf32> to vector<1x512xf32>
      %cst_24 = arith.constant 1.000000e+00 : f32
      %35 = vector.broadcast %cst_24 : f32 to vector<1x512xf32>
      %36 = tpu.concatenate %35, %31, %34 in 0 : vector<1x512xf32>, vector<3x512xf32>, vector<1x512xf32> -> vector<5x512xf32>
      %c0_25 = arith.constant 0 : index
      %c0_26 = arith.constant 0 : index
      %37 = vector.load %arg9[%c0_25, %c0_26] : memref<5x512xf32, #tpu.memory_space<vmem>>, vector<5x512xf32>
      tpu.vector_store %arg9[%c0_25, %c0_26], %36 {strides = array<i32>} : memref<5x512xf32, #tpu.memory_space<vmem>>, vector<5x512xf32>,
      %cst_27 = arith.constant 0x7F800000 : f32
      %38 = vector.broadcast %cst_27 : f32 to vector<8x512xf32>
      %c0_28 = arith.constant 0 : index
      %c0_29 = arith.constant 0 : index
      %39 = vector.load %arg8[%c0_28, %c0_29] : memref<8x512xf32, #tpu.memory_space<vmem>>, vector<8x512xf32>
      tpu.vector_store %arg8[%c0_28, %c0_29], %38 {strides = array<i32>} : memref<8x512xf32, #tpu.memory_space<vmem>>, vector<8x512xf32>,
    } else {
    }
    %5 = arith.mulf %1, %1 : vector<3x128xf32>
    %cst = arith.constant dense<0.000000e+00> : vector<128xf32>
    %6 = vector.multi_reduction <add>, %5, %cst [0] : vector<3x128xf32> to vector<128xf32>
    %7 = vector.shape_cast %6 : vector<128xf32> to vector<1x128xf32>
    %cst_3 = arith.constant -2.000000e+00 : f32
    %8 = vector.broadcast %cst_3 : f32 to vector<3x128xf32>
    %9 = arith.mulf %8, %1 : vector<3x128xf32>
    %cst_4 = arith.constant 1.000000e+00 : f32
    %10 = vector.broadcast %cst_4 : f32 to vector<1x128xf32>
    %11 = tpu.concatenate %7, %9, %10 in 0 : vector<1x128xf32>, vector<3x128xf32>, vector<1x128xf32> -> vector<5x128xf32>
    %cst_5 = arith.constant 0x7F800000 : f32
    %12 = vector.broadcast %cst_5 : f32 to vector<128x128xf32>
    %c0_6 = arith.constant 0 : index
    %c0_7 = arith.constant 0 : index
    %13 = vector.load %arg7[%c0_6, %c0_7] : memref<128x128xf32, #tpu.memory_space<vmem>>, vector<128x128xf32>
    tpu.vector_store %arg7[%c0_6, %c0_7], %12 {strides = array<i32>} : memref<128x128xf32, #tpu.memory_space<vmem>>, vector<128x128xf32>,
    %c0_i32_8 = arith.constant 0 : i32
    %c2_i32 = arith.constant 2 : i32
    %14 = arith.addi %c0_i32_8, %c2_i32 : i32
    %c1_i32 = arith.constant 1 : i32
    scf.for %arg10 = %c0_i32_8 to %14 step %c1_i32  : i32 {
      %c1_i32_20 = arith.constant 1 : i32
      %30 = arith.muli %arg10, %c1_i32_20 : i32
      %c0_i32_21 = arith.constant 0 : i32
      %31 = arith.addi %c0_i32_21, %30 : i32
      %c256_i32 = arith.constant 256 : i32
      %32 = arith.muli %31, %c256_i32 : i32
      %33 = tpu.assume_multiple %32, 256 : i32
      %c0_22 = arith.constant 0 : index
      %34 = arith.index_cast %33 : i32 to index
      %35 = vector.load %arg9[%c0_22, %34] : memref<5x512xf32, #tpu.memory_space<vmem>>, vector<5x256xf32>
      %cst_23 = arith.constant dense<0.000000e+00> : vector<128x256xf32>
      %36 = tpu.matmul %11, %35, %cst_23 {dimension_numbers = #tpu.dot_dimension_numbers<[0], [0], [1], [1], [0, 1, 1, 1], [], []>} : vector<5x128xf32>, vector<5x256xf32>, vector<128x256xf32> -> vector<128x256xf32>
      %37 = vector.extract_strided_slice %36 {offsets = [0, 0], sizes = [128, 128], strides = [1, 1]} : vector<128x256xf32> to vector<128x128xf32>
      %38 = vector.extract_strided_slice %36 {offsets = [0, 128], sizes = [128, 128], strides = [1, 1]} : vector<128x256xf32> to vector<128x128xf32>
      %39 = arith.minimumf %37, %38 : vector<128x128xf32>
      %c0_24 = arith.constant 0 : index
      %c0_25 = arith.constant 0 : index
      %40 = vector.load %arg7[%c0_24, %c0_25] : memref<128x128xf32, #tpu.memory_space<vmem>>, vector<128x128xf32>
      %41 = arith.minimumf %40, %39 : vector<128x128xf32>
      %c0_26 = arith.constant 0 : index
      %c0_27 = arith.constant 0 : index
      %42 = vector.load %arg7[%c0_26, %c0_27] : memref<128x128xf32, #tpu.memory_space<vmem>>, vector<128x128xf32>
      tpu.vector_store %arg7[%c0_26, %c0_27], %41 {strides = array<i32>} : memref<128x128xf32, #tpu.memory_space<vmem>>, vector<128x128xf32>,
      %43 = vector.extract_strided_slice %36 {offsets = [0, 0], sizes = [8, 256], strides = [1, 1]} : vector<128x256xf32> to vector<8x256xf32>
      %44 = vector.extract_strided_slice %36 {offsets = [8, 0], sizes = [8, 256], strides = [1, 1]} : vector<128x256xf32> to vector<8x256xf32>
      %45 = arith.minimumf %43, %44 : vector<8x256xf32>
      %46 = vector.extract_strided_slice %36 {offsets = [16, 0], sizes = [8, 256], strides = [1, 1]} : vector<128x256xf32> to vector<8x256xf32>
      %47 = arith.minimumf %45, %46 : vector<8x256xf32>
      %48 = vector.extract_strided_slice %36 {offsets = [24, 0], sizes = [8, 256], strides = [1, 1]} : vector<128x256xf32> to vector<8x256xf32>
      %49 = arith.minimumf %47, %48 : vector<8x256xf32>
      %50 = vector.extract_strided_slice %36 {offsets = [32, 0], sizes = [8, 256], strides = [1, 1]} : vector<128x256xf32> to vector<8x256xf32>
      %51 = arith.minimumf %49, %50 : vector<8x256xf32>
      %52 = vector.extract_strided_slice %36 {offsets = [40, 0], sizes = [8, 256], strides = [1, 1]} : vector<128x256xf32> to vector<8x256xf32>
      %53 = arith.minimumf %51, %52 : vector<8x256xf32>
      %54 = vector.extract_strided_slice %36 {offsets = [48, 0], sizes = [8, 256], strides = [1, 1]} : vector<128x256xf32> to vector<8x256xf32>
      %55 = arith.minimumf %53, %54 : vector<8x256xf32>
      %56 = vector.extract_strided_slice %36 {offsets = [56, 0], sizes = [8, 256], strides = [1, 1]} : vector<128x256xf32> to vector<8x256xf32>
      %57 = arith.minimumf %55, %56 : vector<8x256xf32>
      %58 = vector.extract_strided_slice %36 {offsets = [64, 0], sizes = [8, 256], strides = [1, 1]} : vector<128x256xf32> to vector<8x256xf32>
      %59 = arith.minimumf %57, %58 : vector<8x256xf32>
      %60 = vector.extract_strided_slice %36 {offsets = [72, 0], sizes = [8, 256], strides = [1, 1]} : vector<128x256xf32> to vector<8x256xf32>
      %61 = arith.minimumf %59, %60 : vector<8x256xf32>
      %62 = vector.extract_strided_slice %36 {offsets = [80, 0], sizes = [8, 256], strides = [1, 1]} : vector<128x256xf32> to vector<8x256xf32>
      %63 = arith.minimumf %61, %62 : vector<8x256xf32>
      %64 = vector.extract_strided_slice %36 {offsets = [88, 0], sizes = [8, 256], strides = [1, 1]} : vector<128x256xf32> to vector<8x256xf32>
      %65 = arith.minimumf %63, %64 : vector<8x256xf32>
      %66 = vector.extract_strided_slice %36 {offsets = [96, 0], sizes = [8, 256], strides = [1, 1]} : vector<128x256xf32> to vector<8x256xf32>
      %67 = arith.minimumf %65, %66 : vector<8x256xf32>
      %68 = vector.extract_strided_slice %36 {offsets = [104, 0], sizes = [8, 256], strides = [1, 1]} : vector<128x256xf32> to vector<8x256xf32>
      %69 = arith.minimumf %67, %68 : vector<8x256xf32>
      %70 = vector.extract_strided_slice %36 {offsets = [112, 0], sizes = [8, 256], strides = [1, 1]} : vector<128x256xf32> to vector<8x256xf32>
      %71 = arith.minimumf %69, %70 : vector<8x256xf32>
      %72 = vector.extract_strided_slice %36 {offsets = [120, 0], sizes = [8, 256], strides = [1, 1]} : vector<128x256xf32> to vector<8x256xf32>
      %73 = arith.minimumf %71, %72 : vector<8x256xf32>
      %c0_28 = arith.constant 0 : index
      %74 = arith.index_cast %33 : i32 to index
      %75 = vector.load %arg8[%c0_28, %74] : memref<8x512xf32, #tpu.memory_space<vmem>>, vector<8x256xf32>
      %76 = arith.minimumf %75, %73 : vector<8x256xf32>
      %c0_29 = arith.constant 0 : index
      %77 = arith.index_cast %33 : i32 to index
      %78 = vector.load %arg8[%c0_29, %77] : memref<8x512xf32, #tpu.memory_space<vmem>>, vector<8x256xf32>
      tpu.vector_store %arg8[%c0_29, %77], %76 {strides = array<i32>} : memref<8x512xf32, #tpu.memory_space<vmem>>, vector<8x256xf32>,
    }
    %c2_i32_9 = arith.constant 2 : i32
    %c0_10 = arith.constant 0 : index
    %c0_11 = arith.constant 0 : index
    %15 = vector.load %arg7[%c0_10, %c0_11] : memref<128x128xf32, #tpu.memory_space<vmem>>, vector<128x128xf32>
    %cst_12 = arith.constant dense<0x7F800000> : vector<128xf32>
    %16 = vector.multi_reduction <minimumf>, %15, %cst_12 [1] : vector<128x128xf32> to vector<128xf32>
    %17 = vector.shape_cast %16 : vector<128xf32> to vector<128x1xf32>
    %cst_13 = arith.constant 0.000000e+00 : f32
    %18 = vector.broadcast %cst_13 : f32 to vector<128x1xf32>
    %19 = arith.maximumf %17, %18 : vector<128x1xf32>
    %20 = tpu.transpose %19, [1, 0] : vector<128x1xf32> -> vector<1x128xf32>
    %cst_14 = arith.constant 9.99999993E-9 : f32
    %21 = vector.broadcast %cst_14 : f32 to vector<1x128xf32>
    %22 = arith.addf %20, %21 : vector<1x128xf32>
    %23 = math.sqrt %22 : vector<1x128xf32>
    %c0_15 = arith.constant 0 : index
    %c0_16 = arith.constant 0 : index
    %c0_17 = arith.constant 0 : index
    %24 = vector.load %arg5[%c0_15, %c0_16, %c0_17] : memref<1x1x128xf32, #tpu.memory_space<vmem>>, vector<1x1x128xf32>
    %25 = vector.shape_cast %24 : vector<1x1x128xf32> to vector<1x128xf32>
    %26 = vector.shape_cast %23 : vector<1x128xf32> to vector<1x1x128xf32>
    tpu.vector_store %arg5[%c0_15, %c0_16, %c0_17], %26 {strides = array<i32>} : memref<1x1x128xf32, #tpu.memory_space<vmem>>, vector<1x1x128xf32>,
    %c2_i32_18 = arith.constant 2 : i32
    %27 = arith.cmpi eq, %arg2, %c2_i32_18 : i32
    %28 = arith.extui %27 : i1 to i32
    %c0_i32_19 = arith.constant 0 : i32
    %29 = arith.cmpi ne, %28, %c0_i32_19 : i32
    scf.if %29 {
      %c0_20 = arith.constant 0 : index
      %c0_21 = arith.constant 0 : index
      %30 = vector.load %arg8[%c0_20, %c0_21] : memref<8x512xf32, #tpu.memory_space<vmem>>, vector<8x512xf32>
      %cst_22 = arith.constant dense<0x7F800000> : vector<512xf32>
      %31 = vector.multi_reduction <minimumf>, %30, %cst_22 [0] : vector<8x512xf32> to vector<512xf32>
      %32 = vector.shape_cast %31 : vector<512xf32> to vector<1x512xf32>
      %cst_23 = arith.constant 0.000000e+00 : f32
      %33 = vector.broadcast %cst_23 : f32 to vector<1x512xf32>
      %34 = arith.maximumf %32, %33 : vector<1x512xf32>
      %cst_24 = arith.constant 9.99999993E-9 : f32
      %35 = vector.broadcast %cst_24 : f32 to vector<1x512xf32>
      %36 = arith.addf %34, %35 : vector<1x512xf32>
      %37 = math.sqrt %36 : vector<1x512xf32>
      %c0_25 = arith.constant 0 : index
      %c0_26 = arith.constant 0 : index
      %c0_27 = arith.constant 0 : index
      %38 = vector.load %arg6[%c0_25, %c0_26, %c0_27] : memref<1x1x512xf32, #tpu.memory_space<vmem>>, vector<1x1x512xf32>
      %39 = vector.shape_cast %38 : vector<1x1x512xf32> to vector<1x512xf32>
      %40 = vector.shape_cast %37 : vector<1x512xf32> to vector<1x1x512xf32>
      tpu.vector_store %arg6[%c0_25, %c0_26, %c0_27], %40 {strides = array<i32>} : memref<1x1x512xf32, #tpu.memory_space<vmem>>, vector<1x1x512xf32>,
    } else {
    }
    return
  }
  func.func @transform_0(%arg0: i32, %arg1: i32, %arg2: i32) -> (i32, i32, i32) {
    %c3_i32 = arith.constant 3 : i32
    %0 = arith.muli %arg1, %c3_i32 : i32
    %1 = arith.addi %0, %arg2 : i32
    %c0_i32 = arith.constant 0 : i32
    %c0_i32_0 = arith.constant 0 : i32
    return %arg0, %c0_i32, %1 : i32, i32, i32
  }
  func.func @transform_1(%arg0: i32, %arg1: i32, %arg2: i32) -> (i32, i32, i32) {
    %c0_i32 = arith.constant 0 : i32
    %c0_i32_0 = arith.constant 0 : i32
    %c0_i32_1 = arith.constant 0 : i32
    return %arg0, %c0_i32, %c0_i32_0 : i32, i32, i32
  }
  func.func @transform_2(%arg0: i32, %arg1: i32, %arg2: i32) -> (i32, i32, i32) {
    %c3_i32 = arith.constant 3 : i32
    %0 = arith.muli %arg1, %c3_i32 : i32
    %1 = arith.addi %0, %arg2 : i32
    %c0_i32 = arith.constant 0 : i32
    %c0_i32_0 = arith.constant 0 : i32
    return %arg0, %c0_i32, %1 : i32, i32, i32
  }
  func.func @transform_3(%arg0: i32, %arg1: i32, %arg2: i32) -> (i32, i32, i32) {
    %c1_i32 = arith.constant 1 : i32
    %0 = arith.muli %arg0, %c1_i32 : i32
    %1 = arith.addi %0, %arg1 : i32
    %c0_i32 = arith.constant 0 : i32
    %c0_i32_0 = arith.constant 0 : i32
    %c0_i32_1 = arith.constant 0 : i32
    return %1, %c0_i32, %c0_i32_0 : i32, i32, i32
  }
}

</mosaic_0001>

<llo_original>
// kernel: tpu_custom_call.1
$region0: #{tpu_custom_call.1}
  #allocation0 [shape = 'u32[]', space=smem, size = 0x4, offset = 0x4, fixed_abs, tag = 'smem constant byte address 0x4 - core index']
  #allocation1 [shape = 'u32[144,128]{1,0:T(1,128)}', space=vmem, size = 0x12000, scoped, tag = 'internal scratch']
  #allocation2 [shape = 'f32[128,128]{1,0:T(8,128)}', space=vmem, size = 0x10000, scoped, tag = 'scratch operand']
  #allocation3 [shape = 'f32[8,512]{1,0:T(8,128)}', space=vmem, size = 0x4000, scoped, tag = 'scratch operand']
  #allocation4 [shape = 'f32[5,512]{1,0:T(8,128)}', space=vmem, size = 0x4000, scoped, tag = 'scratch operand']
  %s0 = inlined_call_operand.vmem [shape: f32[2,3,384], index: 0, kind: input, shape index: {}]
  %s1 = inlined_call_operand.vmem [shape: f32[2,3,512], index: 1, kind: input, shape index: {}]
  %s2 = inlined_call_operand.hbm [shape: f32[2,1,384], index: 2, kind: output, shape index: {0}]
  %s3 = inlined_call_operand.hbm [shape: f32[2,1,512], index: 3, kind: output, shape index: {1}]
  %4 = xla_tuple %s2, %s3
  %s5 = sld [smem:[#allocation0]]
  $region64: #{tpu_custom_call.1} parent=0
    _
  %s7 = ssub.s32 1, %s5
  %s8 = scalar_select 0, %s7, %s5
  $region1: #{tpu_custom_call.1} parent=0
    #allocation5 [shape = 'u8[1024]{0}', space=vmem, size = 0x400, scoped, tag = 'output window, operand 0']
    #allocation6 [shape = 's32[2]{0}', space=sflag, size = 0x8, scoped, tag = 'scoped memory for tpu_custom_call.1']
    #allocation7 [shape = 'u8[4096]{0}', space=vmem, size = 0x1000, scoped, tag = 'output window, operand 1']
    #allocation8 [shape = 's32[2]{0}', space=sflag, size = 0x8, scoped, tag = 'scoped memory for tpu_custom_call.1']
    %9 = vsyncpa [#allocation6], 0
    %s10 = scalar_lea.sflag [#allocation6], 1
    %11 = vsyncpa %s10, 0
    %12 = vsyncpa [#allocation8], 0
    %s13 = scalar_lea.sflag [#allocation8], 1
    %14 = vsyncpa %s13, 0
    loop: start=0, step=1, limit=8
    $region2: #{tpu_custom_call.1} parent=1 // loop_pre_header
      _
    $region3: #{tpu_custom_call.1} parent=1 // loop_header
      %s16 = sphi 0, %s20
      %p17 = scmp.ge.s32.totalorder %s16, 8
      %s23 = sphi 0, %s42
      %s24 = sphi 0, %s38
      %s25 = sphi 0, %s34
      %s26 = sphi 0, %s23
      %s27 = sphi 0, %s24
      %s28 = sphi 0, %s25
      %s29 = sphi 0, %s26
      %s30 = sphi 0, %s27
      %s31 = sphi 0, %s28
      %s51 = sphi 0, %s53
      %s54 = sphi 0, %s51
      %s55 = sphi 0, %s54
      %s71 = sphi 0, %s55
      %s77 = sphi 0, %s79
      %s80 = sphi 0, %s77
      %s81 = sphi 0, %s80
      %s97 = sphi 0, %s81
      %s109 = sphi 0, %s111
      %s112 = sphi 0, %s109
      %s113 = sphi 0, %s112
      %s129 = sphi 0, %s113
      %s137 = sphi 0, %s139
      %s140 = sphi 0, %s137
      %s141 = sphi 0, %s140
      %s157 = sphi 0, %s141
    $region4: #{tpu_custom_call.1} parent=1 // loop_header_branch
      %19 = sbr.rel (%p17) target = $region8
    $region5: #{tpu_custom_call.1} parent=1 // loop_body
      %s21 = ssub.s32 %s16, 1
      %s22 = ssub.s32 %s16, 2
      %s32 = sadd.s32 1, %s25
      %p33 = scmp.ge.s32.totalorder %s32, 3
      %s34 = scalar_select %p33, 0, %s32
      %s35 = sadd.s32 1, %s24
      %s36 = scalar_select %p33, %s35, %s24
      %p37 = scmp.ge.s32.totalorder %s36, 1
      %s38 = scalar_select %p37, 0, %s36
      %s39 = sadd.s32 1, %s23
      %s40 = scalar_select %p37, %s39, %s23
      %p41 = scmp.ge.s32.totalorder %s40, 2
      %s42 = scalar_select %p41, 0, %s40
      %s43 = smul.u32 %s24, 3
      %s44 = sadd.s32 %s43, %s25
      %s45 = smul.u32 %s38, 3
      %s46 = sadd.s32 %s45, %s34
      %s47 = ssub.s32 %s23, %s42
      %s48 = ssub.s32 %s44, %s46
      %s49 = sor.u32 %s47, %s48
      %p50 = scmp.eq.s32.totalorder %s49, 0
      %s52 = sadd.s32 %s51, 1
      %s53 = scalar_select %p50, %s51, %s52
      %p56 = pneg %p50
      %p57 = scmp.eq.s32.totalorder %s16, 5
      %p58 = por %p56, %p57
      %p59 = scmp.ne.s32.totalorder %s51, %s54
      %p60 = scmp.eq.s32.totalorder %s16, 0
      %p61 = por %p59, %p60
      %p62 = scmp.ne.s32.totalorder %s51, %s54
      %p63 = scmp.eq.s32.totalorder %s21, 5
      %p64 = por %p62, %p63
      %p65 = scmp.ne.s32.totalorder %s54, %s55
      %p66 = scmp.eq.s32.totalorder %s21, 0
      %p67 = por %p65, %p66
      %p68 = scmp.ne.s32.totalorder %s54, %s55
      %p69 = scmp.eq.s32.totalorder %s22, 5
      %p70 = por %p68, %p69
      %p72 = scmp.ne.s32.totalorder %s55, %s71
      %p73 = scmp.eq.s32.totalorder %s22, 0
      %p74 = por %p72, %p73
      %s75 = ssub.s32 %s23, %s42
      %p76 = scmp.eq.s32.totalorder %s75, 0
      %s78 = sadd.s32 %s77, 1
      %s79 = scalar_select %p76, %s77, %s78
      %p82 = pneg %p76
      %p83 = scmp.eq.s32.totalorder %s16, 5
      %p84 = por %p82, %p83
      %p85 = scmp.ne.s32.totalorder %s77, %s80
      %p86 = scmp.eq.s32.totalorder %s16, 0
      %p87 = por %p85, %p86
      %p88 = scmp.ne.s32.totalorder %s77, %s80
      %p89 = scmp.eq.s32.totalorder %s21, 5
      %p90 = por %p88, %p89
      %p91 = scmp.ne.s32.totalorder %s80, %s81
      %p92 = scmp.eq.s32.totalorder %s21, 0
      %p93 = por %p91, %p92
      %p94 = scmp.ne.s32.totalorder %s80, %s81
      %p95 = scmp.eq.s32.totalorder %s22, 5
      %p96 = por %p94, %p95
      %p98 = scmp.ne.s32.totalorder %s81, %s97
      %p99 = scmp.eq.s32.totalorder %s22, 0
      %p100 = por %p98, %p99
      %s101 = smul.u32 %s24, 3
      %s102 = sadd.s32 %s101, %s25
      %s103 = smul.u32 %s38, 3
      %s104 = sadd.s32 %s103, %s34
      %s105 = ssub.s32 %s23, %s42
      %s106 = ssub.s32 %s102, %s104
      %s107 = sor.u32 %s105, %s106
      %p108 = scmp.eq.s32.totalorder %s107, 0
      %s110 = sadd.s32 %s109, 1
      %s111 = scalar_select %p108, %s109, %s110
      %p114 = pneg %p108
      %p115 = scmp.eq.s32.totalorder %s16, 5
      %p116 = por %p114, %p115
      %p117 = scmp.ne.s32.totalorder %s109, %s112
      %p118 = scmp.eq.s32.totalorder %s16, 0
      %p119 = por %p117, %p118
      %p120 = scmp.ne.s32.totalorder %s109, %s112
      %p121 = scmp.eq.s32.totalorder %s21, 5
      %p122 = por %p120, %p121
      %p123 = scmp.ne.s32.totalorder %s112, %s113
      %p124 = scmp.eq.s32.totalorder %s21, 0
      %p125 = por %p123, %p124
      %p126 = scmp.ne.s32.totalorder %s112, %s113
      %p127 = scmp.eq.s32.totalorder %s22, 5
      %p128 = por %p126, %p127
      %p130 = scmp.ne.s32.totalorder %s113, %s129
      %p131 = scmp.eq.s32.totalorder %s22, 0
      %p132 = por %p130, %p131
      %s133 = sadd.s32 %s23, %s24
      %s134 = sadd.s32 %s42, %s38
      %s135 = ssub.s32 %s133, %s134
      %p136 = scmp.eq.s32.totalorder %s135, 0
      %s138 = sadd.s32 %s137, 1
      %s139 = scalar_select %p136, %s137, %s138
      %p142 = pneg %p136
      %p143 = scmp.eq.s32.totalorder %s16, 5
      %p144 = por %p142, %p143
      %p145 = scmp.ne.s32.totalorder %s137, %s140
      %p146 = scmp.eq.s32.totalorder %s16, 0
      %p147 = por %p145, %p146
      %p148 = scmp.ne.s32.totalorder %s137, %s140
      %p149 = scmp.eq.s32.totalorder %s21, 5
      %p150 = por %p148, %p149
      %p151 = scmp.ne.s32.totalorder %s140, %s141
      %p152 = scmp.eq.s32.totalorder %s21, 0
      %p153 = por %p151, %p152
      %p154 = scmp.ne.s32.totalorder %s140, %s141
      %p155 = scmp.eq.s32.totalorder %s22, 5
      %p156 = por %p154, %p155
      %p158 = scmp.ne.s32.totalorder %s141, %s157
      %p159 = scmp.eq.s32.totalorder %s22, 0
      %p160 = por %p158, %p159
      %p161 = scmp.le.s32.totalorder 1, %s16
      %p162 = scmp.lt.s32.totalorder %s16, 7
      %p163 = pnand %p161, %p162
      %p164 = pneg %p163
      // Predicated region
      $region9: #{tpu_custom_call.1} parent=5 // pred_check
        _
      $region10: #{tpu_custom_call.1} parent=5 // pred_check_branch
        %166 = sbr.rel (%p163) target = $region12
      $region11: #{tpu_custom_call.1} parent=5 // pred_region
        %s167 = ssub.s32 %s16, 1
      $region12: #{tpu_custom_call.1} parent=5 // pred_fallthru
        _
      %p168 = scmp.lt.s32.totalorder %s16, 6
      // Predicated region
      $region13: #{tpu_custom_call.1} parent=5 // pred_check
        %p169 = pneg %p168
      $region14: #{tpu_custom_call.1} parent=5 // pred_check_branch
        %171 = sbr.rel (%p169) target = $region16
      $region15: #{tpu_custom_call.1} parent=5 // pred_region
        // Predicated region
        $region17: #{tpu_custom_call.1} parent=15 // pred_check
          %p172 = pneg %p61
        $region18: #{tpu_custom_call.1} parent=15 // pred_check_branch
          %174 = sbr.rel (%p172) target = $region20
        $region19: #{tpu_custom_call.1} parent=15 // pred_region
          %s175 = smul.u32 %s24, 3
          %s176 = sadd.s32 %s175, %s25
          %p177 = scmp.lt.s32.totalorder %s23, 1
          %s178 = scalar_select %p177, %s23, 1
          %p179 = scmp.lt.s32.totalorder %s176, 2
          %s180 = scalar_select %p179, %s176, 2
          %s181 = smul.addr %s178, 3
          %s182 = sadd.s32 %s180, %s181
          %s183 = smul.addr %s182, 4
          %s184 = scalar_lea.vmem %s0, %s183
          %s185 = smul.u32 %s24, 3
          %s186 = sadd.s32 %s185, %s25
        $region20: #{tpu_custom_call.1} parent=15 // pred_fallthru
          _
        // Predicated region
        $region21: #{tpu_custom_call.1} parent=15 // pred_check
          %p187 = pneg %p87
        $region22: #{tpu_custom_call.1} parent=15 // pred_check_branch
          %189 = sbr.rel (%p187) target = $region24
        $region23: #{tpu_custom_call.1} parent=15 // pred_region
          %p190 = scmp.lt.s32.totalorder %s23, 1
          %s191 = scalar_select %p190, %s23, 1
          %s192 = smul.addr %s191, 4
          %s193 = smul.addr %s192, 4
          %s194 = scalar_lea.vmem %s1, %s193
        $region24: #{tpu_custom_call.1} parent=15 // pred_fallthru
          _
      $region16: #{tpu_custom_call.1} parent=5 // pred_fallthru
        _
      %p195 = scmp.le.s32.totalorder 1, %s16
      %p196 = scmp.lt.s32.totalorder %s16, 7
      %p197 = pnand %p195, %p196
      %p198 = pneg %p197
      // Predicated region
      $region25: #{tpu_custom_call.1} parent=5 // pred_check
        _
      $region26: #{tpu_custom_call.1} parent=5 // pred_check_branch
        %200 = sbr.rel (%p197) target = $region28
      $region27: #{tpu_custom_call.1} parent=5 // pred_region
        %s201 = ssub.s32 %s16, 1
        %s202 = smul.u32 %s27, 3
        %s203 = sadd.s32 %s202, %s28
        %p204 = scmp.lt.s32.totalorder %s26, 1
        %s205 = scalar_select %p204, %s26, 1
        %p206 = scmp.lt.s32.totalorder %s203, 2
        %s207 = scalar_select %p206, %s203, 2
        %s208 = smul.addr %s205, 3
        %s209 = sadd.s32 %s207, %s208
        %s210 = smul.addr %s209, 4
        %s211 = scalar_lea.vmem %s0, %s210
        %p212 = pneg %p67
        %p213 = pneg %p64
        %p214 = scmp.lt.s32.totalorder %s26, 1
        %s215 = scalar_select %p214, %s26, 1
        %s216 = smul.addr %s215, 4
        %s217 = smul.addr %s216, 4
        %s218 = scalar_lea.vmem %s1, %s217
        %p219 = pneg %p93
        %p220 = pneg %p90
        %p221 = pneg %p125
        %p222 = pneg %p122
        %s223 = sand.u32 %s112, 1
        %s224 = scalar_lea.sflag [#allocation6], %s223
        %s225 = sand.u32 %s112, 1
        %s226 = scalar_lea.vmem [#allocation5], %s225
        %p227 = pneg %p153
        %p228 = pneg %p150
        %s229 = sand.u32 %s140, 1
        %s230 = scalar_lea.sflag [#allocation8], %s229
        %s231 = sand.u32 %s140, 1
        %s232 = smul.addr %s231, 4
        %s233 = scalar_lea.vmem [#allocation7], %s232
        %s234 = smul.u32 %s27, 3
        %s235 = sadd.s32 %s234, %s28
        %p236 = scmp.lt.s32.totalorder %s26, 1
        %s237 = scalar_select %p236, %s26, 1
        %p238 = scmp.lt.s32.totalorder %s235, 2
        %s239 = scalar_select %p238, %s235, 2
        %s240 = smul.addr %s237, 3
        %s241 = sadd.s32 %s239, %s240
        %s242 = smul.addr %s241, 4
        %s243 = scalar_lea.vmem %s0, %s242
        %s244 = smul.u32 %s27, 3
        %s245 = sadd.s32 %s244, %s28
        %p246 = scmp.lt.s32.totalorder %s26, 1
        %s247 = scalar_select %p246, %s26, 1
        %s248 = smul.addr %s247, 4
        %s249 = smul.addr %s248, 4
        %s250 = scalar_lea.vmem %s1, %s249
        %s251 = smul.u32 %s27, 3
        %s252 = sadd.s32 %s251, %s28
        %s253 = sadd.s32 %s26, %s27
        %v254 = vld [vmem:[%s243] sm:$0x7]
        %p255 = scmp.eq.s32.totalorder %s28, 0
        // Predicated region
        $region29: #{tpu_custom_call.1} parent=27 // pred_check
          %p256 = pneg %p255
        $region30: #{tpu_custom_call.1} parent=27 // pred_check_branch
          %258 = sbr.rel (%p256) target = $region32
        $region31: #{tpu_custom_call.1} parent=27 // pred_region
          %v259 = vld [vmem:[%s250] sm:$0x77]
          %v260 = vld [vmem:[%s250 + $0x8] sm:$0x77]
          %v261 = vmul.f32 %v259, %v259
          %v262 = vmul.f32 %v260, %v260
          %v265 = vcombine.high %v261, %v261
          %v266 = vcombine.high %v262, %v262
          %vm269 = vcmask 1042432
          %v270 = vsel %vm269, %v261, 0.0
          %v271 = vrot.slane %v270, 4
          %v272 = vadd.f32 %v270, %v271
          %v273 = vrot.slane %v272, 2
          %v274 = vadd.f32 %v272, %v273
          %v275 = vrot.slane %v274, 1
          %v276 = vadd.f32 %v274, %v275
          %v277 = vsel %vm269, %v265, 0.0
          %v278 = vrot.slane %v277, 4
          %v279 = vadd.f32 %v277, %v278
          %v280 = vrot.slane %v279, 2
          %v281 = vadd.f32 %v279, %v280
          %v282 = vrot.slane %v281, 1
          %v283 = vadd.f32 %v281, %v282
          %v284 = vsel %vm269, %v262, 0.0
          %v285 = vrot.slane %v284, 4
          %v286 = vadd.f32 %v284, %v285
          %v287 = vrot.slane %v286, 2
          %v288 = vadd.f32 %v286, %v287
          %v289 = vrot.slane %v288, 1
          %v290 = vadd.f32 %v288, %v289
          %v291 = vsel %vm269, %v266, 0.0
          %v292 = vrot.slane %v291, 4
          %v293 = vadd.f32 %v291, %v292
          %v294 = vrot.slane %v293, 2
          %v295 = vadd.f32 %v293, %v294
          %v296 = vrot.slane %v295, 1
          %v297 = vadd.f32 %v295, %v296
          %v300 = vcombine.high %v259, %v259
          %v301 = vcombine.high %v260, %v260
          %v302 = vrot.slane %v259, 7
          %v303 = vrot.slane %v300, 7
          %v304 = vrot.slane %v260, 7
          %v305 = vrot.slane %v301, 7
          %vm310 = vcmask 1040384
          %v311 = vsel %vm310, 1.0, %v302
          %v312 = vsel %vm310, 1.0, %v303
          %v313 = vsel %vm310, 1.0, %v304
          %v314 = vsel %vm310, 1.0, %v305
          %vm315 = vcmask 1043456
          %v316 = vsel %vm315, %v311, %v276
          %v317 = vsel %vm315, %v312, %v283
          %v318 = vsel %vm315, %v313, %v290
          %v319 = vsel %vm315, %v314, %v297
          %320 = vst [vmem:[#allocation4] sm:$0x1f] %v316
          %321 = vst [vmem:[#allocation4 + $0x8] sm:$0x1f] %v317
          %322 = vst [vmem:[#allocation4 + $0x10] sm:$0x1f] %v318
          %323 = vst [vmem:[#allocation4 + $0x18] sm:$0x1f] %v319
          %324 = vst [vmem:[#allocation3] sm:$0xff] inf
          %325 = vst [vmem:[#allocation3 + $0x8] sm:$0xff] inf
          %326 = vst [vmem:[#allocation3 + $0x10] sm:$0xff] inf
          %327 = vst [vmem:[#allocation3 + $0x18] sm:$0xff] inf
        $region32: #{tpu_custom_call.1} parent=27 // pred_fallthru
          _
        %v328 = vmul.f32 %v254, %v254
        %vm329 = vcmask 1042432
        %v330 = vsel %vm329, %v328, 0.0
        %v331 = vrot.slane %v330, 4
        %v332 = vadd.f32 %v330, %v331
        %v333 = vrot.slane %v332, 2
        %v334 = vadd.f32 %v332, %v333
        %v335 = vrot.slane %v334, 1
        %v336 = vadd.f32 %v334, %v335
        %v337 = vmul.f32 %v254, -2.0
        %v339 = vrot.slane %v337, 7
        %vm341 = vcmask 1040384
        %v342 = vsel %vm341, %v336, %v339
        %vm343 = vcmask 1043456
        %v344 = vsel %vm343, %v342, 1.0
        %345 = vst [vmem:[#allocation2] sm:$0xff] inf
        %346 = vst [vmem:[#allocation2 + $0x8] sm:$0xff] inf
        %347 = vst [vmem:[#allocation2 + $0x10] sm:$0xff] inf
        %348 = vst [vmem:[#allocation2 + $0x18] sm:$0xff] inf
        %349 = vst [vmem:[#allocation2 + $0x20] sm:$0xff] inf
        %350 = vst [vmem:[#allocation2 + $0x28] sm:$0xff] inf
        %351 = vst [vmem:[#allocation2 + $0x30] sm:$0xff] inf
        %352 = vst [vmem:[#allocation2 + $0x38] sm:$0xff] inf
        %353 = vst [vmem:[#allocation2 + $0x40] sm:$0xff] inf
        %354 = vst [vmem:[#allocation2 + $0x48] sm:$0xff] inf
        %355 = vst [vmem:[#allocation2 + $0x50] sm:$0xff] inf
        %356 = vst [vmem:[#allocation2 + $0x58] sm:$0xff] inf
        %357 = vst [vmem:[#allocation2 + $0x60] sm:$0xff] inf
        %358 = vst [vmem:[#allocation2 + $0x68] sm:$0xff] inf
        %359 = vst [vmem:[#allocation2 + $0x70] sm:$0xff] inf
        %360 = vst [vmem:[#allocation2 + $0x78] sm:$0xff] inf
        loop: start=0, step=1, limit=2
        $region33: #{tpu_custom_call.1} parent=27 // loop_pre_header
          _
        $region34: #{tpu_custom_call.1} parent=27 // loop_header
          %s362 = sphi 0, %s366
          %p363 = scmp.ge.s32.totalorder %s362, 2
        $region35: #{tpu_custom_call.1} parent=27 // loop_header_branch
          %365 = sbr.rel (%p363) target = $region39
        $region36: #{tpu_custom_call.1} parent=27 // loop_body
          %s367 = smul.u32 %s362, 256
          %s368 = sshra.s32 %s367, 7
          %s369 = sand.u32 %s367, 127
          %s370 = smul.addr %s368, 8
          %s371 = scalar_lea.vmem [#allocation4], %s370
          %v372 = vld [vmem:[%s371] sm:$0x1f]
          %v373 = vld [vmem:[%s371 + $0x8] sm:$0x1f]
          %374 = vxpose.xlu0.b32.start [1/16] %v344, 128
          %375 = vxpose.xlu0.b32.cont [2/16] 0.0, 128
          %376 = vxpose.xlu0.b32.cont [3/16] 0.0, 128
          %377 = vxpose.xlu0.b32.cont [4/16] 0.0, 128
          %378 = vxpose.xlu0.b32.cont [5/16] 0.0, 128
          %379 = vxpose.xlu0.b32.cont [6/16] 0.0, 128
          %380 = vxpose.xlu0.b32.cont [7/16] 0.0, 128
          %381 = vxpose.xlu0.b32.cont [8/16] 0.0, 128
          %382 = vxpose.xlu0.b32.cont [9/16] 0.0, 128
          %383 = vxpose.xlu0.b32.cont [10/16] 0.0, 128
          %384 = vxpose.xlu0.b32.cont [11/16] 0.0, 128
          %385 = vxpose.xlu0.b32.cont [12/16] 0.0, 128
          %386 = vxpose.xlu0.b32.cont [13/16] 0.0, 128
          %387 = vxpose.xlu0.b32.cont [14/16] 0.0, 128
          %388 = vxpose.xlu0.b32.cont [15/16] 0.0, 128
          %389 = vxpose.xlu0.b32.end [16/16] 0.0, 128
          %v390 = vpop.trf.xlu0
          %v391 = vpop.trf.xlu0
          %v392 = vpop.trf.xlu0
          %v393 = vpop.trf.xlu0
          %v394 = vpop.trf.xlu0
          %v395 = vpop.trf.xlu0
          %v396 = vpop.trf.xlu0
          %v397 = vpop.trf.xlu0
          %v398 = vpop.trf.xlu0
          %v399 = vpop.trf.xlu0
          %v400 = vpop.trf.xlu0
          %v401 = vpop.trf.xlu0
          %v402 = vpop.trf.xlu0
          %v403 = vpop.trf.xlu0
          %v404 = vpop.trf.xlu0
          %v405 = vpop.trf.xlu0
          %vm406 = vcmask 39936
          %v408 = vsel %vm406, %v390, 0
          %v411 = vsel %vm406, %v391, 0
          %v414 = vsel %vm406, %v392, 0
          %v417 = vsel %vm406, %v393, 0
          %v420 = vsel %vm406, %v394, 0
          %v423 = vsel %vm406, %v395, 0
          %v426 = vsel %vm406, %v396, 0
          %v429 = vsel %vm406, %v397, 0
          %v432 = vsel %vm406, %v398, 0
          %v435 = vsel %vm406, %v399, 0
          %v438 = vsel %vm406, %v400, 0
          %v441 = vsel %vm406, %v401, 0
          %v444 = vsel %vm406, %v402, 0
          %v447 = vsel %vm406, %v403, 0
          %v450 = vsel %vm406, %v404, 0
          %v453 = vsel %vm406, %v405, 0
          %vm455 = vcmask 1044480
          %v457 = vsel %vm455, %v372, 0
          %v460 = vsel %vm455, %v373, 0
          %462 = vmatprep.subr.mxu0 %v460
          %463 = vmatpush1.msra.mxu0 %v457
          %464 = vmatprep.subr.mxu0 0.0
          %465 = vmatpush1.msra.mxu0 0.0
          %466 = vmatprep.subr.mxu0 0.0
          %467 = vmatpush1.msra.mxu0 0.0
          %468 = vmatprep.subr.mxu0 0.0
          %469 = vmatpush1.msra.mxu0 0.0
          %470 = vmatprep.subr.mxu0 0.0
          %471 = vmatpush1.msra.mxu0 0.0
          %472 = vmatprep.subr.mxu0 0.0
          %473 = vmatpush1.msra.mxu0 0.0
          %474 = vmatprep.subr.mxu0 0.0
          %475 = vmatpush1.msra.mxu0 0.0
          %476 = vmatprep.subr.mxu0 0.0
          %477 = vmatpush1.msra.mxu0 0.0
          %478 = vmatprep.subr.mxu0 0.0
          %479 = vmatpush1.msra.mxu0 0.0
          %480 = vmatprep.subr.mxu0 0.0
          %481 = vmatpush1.msra.mxu0 0.0
          %482 = vmatprep.subr.mxu0 0.0
          %483 = vmatpush1.msra.mxu0 0.0
          %484 = vmatprep.subr.mxu0 0.0
          %485 = vmatpush1.msra.mxu0 0.0
          %486 = vmatprep.subr.mxu0 0.0
          %487 = vmatpush1.msra.mxu0 0.0
          %488 = vmatprep.subr.mxu0 0.0
          %489 = vmatpush1.msra.mxu0 0.0
          %490 = vmatprep.subr.mxu0 0.0
          %491 = vmatpush1.msra.mxu0 0.0
          %492 = vmatprep.subr.mxu0 0.0
          %493 = vmatpush1.msra.mxu0 0.0
          %494 = vmatprep.subr.mxu0 0.0
          %495 = vmatpush1.msra.mxu0 0.0
          %496 = vmatprep.subr.mxu0 0.0
          %497 = vmatpush1.msra.mxu0 0.0
          %498 = vmatprep.subr.mxu0 0.0
          %499 = vmatpush1.msra.mxu0 0.0
          %500 = vmatprep.subr.mxu0 0.0
          %501 = vmatpush1.msra.mxu0 0.0
          %502 = vmatprep.subr.mxu0 0.0
          %503 = vmatpush1.msra.mxu0 0.0
          %504 = vmatprep.subr.mxu0 0.0
          %505 = vmatpush1.msra.mxu0 0.0
          %506 = vmatprep.subr.mxu0 0.0
          %507 = vmatpush1.msra.mxu0 0.0
          %508 = vmatprep.subr.mxu0 0.0
          %509 = vmatpush1.msra.mxu0 0.0
          %510 = vmatprep.subr.mxu0 0.0
          %511 = vmatpush1.msra.mxu0 0.0
          %512 = vmatprep.subr.mxu0 0.0
          %513 = vmatpush1.msra.mxu0 0.0
          %514 = vmatprep.subr.mxu0 0.0
          %515 = vmatpush1.msra.mxu0 0.0
          %516 = vmatprep.subr.mxu0 0.0
          %517 = vmatpush1.msra.mxu0 0.0
          %518 = vmatprep.subr.mxu0 0.0
          %519 = vmatpush1.msra.mxu0 0.0
          %520 = vmatprep.subr.mxu0 0.0
          %521 = vmatpush1.msra.mxu0 0.0
          %522 = vmatprep.subr.mxu0 0.0
          %523 = vmatpush1.msra.mxu0 0.0
          %524 = vmatprep.subr.mxu0 0.0
          %525 = vmatpush1.msra.mxu0 0.0
          %526 = vmatprep.mubr.f32.mxu0 0.0
          %527 = vmatmul.mubr.f32.gmra.mrb[0].mxu0 %v408
          %v528 = vpop.f32.mrb[0].mxu0
          %v529 = vadd.f32 0.0, %v528
          %v530 = vpop.f32.mrb[0].mxu0
          %v531 = vadd.f32 0.0, %v530
          %532 = vmatprep.mubr.f32.mxu0 0.0
          %533 = vmatmul.mubr.f32.gmra.mrb[0].mxu0 %v411
          %v534 = vpop.f32.mrb[0].mxu0
          %v535 = vadd.f32 0.0, %v534
          %v536 = vpop.f32.mrb[0].mxu0
          %v537 = vadd.f32 0.0, %v536
          %538 = vmatprep.mubr.f32.mxu0 0.0
          %539 = vmatmul.mubr.f32.gmra.mrb[0].mxu0 %v414
          %v540 = vpop.f32.mrb[0].mxu0
          %v541 = vadd.f32 0.0, %v540
          %v542 = vpop.f32.mrb[0].mxu0
          %v543 = vadd.f32 0.0, %v542
          %544 = vmatprep.mubr.f32.mxu0 0.0
          %545 = vmatmul.mubr.f32.gmra.mrb[0].mxu0 %v417
          %v546 = vpop.f32.mrb[0].mxu0
          %v547 = vadd.f32 0.0, %v546
          %v548 = vpop.f32.mrb[0].mxu0
          %v549 = vadd.f32 0.0, %v548
          %550 = vmatprep.mubr.f32.mxu0 0.0
          %551 = vmatmul.mubr.f32.gmra.mrb[0].mxu0 %v420
          %v552 = vpop.f32.mrb[0].mxu0
          %v553 = vadd.f32 0.0, %v552
          %v554 = vpop.f32.mrb[0].mxu0
          %v555 = vadd.f32 0.0, %v554
          %556 = vmatprep.mubr.f32.mxu0 0.0
          %557 = vmatmul.mubr.f32.gmra.mrb[0].mxu0 %v423
          %v558 = vpop.f32.mrb[0].mxu0
          %v559 = vadd.f32 0.0, %v558
          %v560 = vpop.f32.mrb[0].mxu0
          %v561 = vadd.f32 0.0, %v560
          %562 = vmatprep.mubr.f32.mxu0 0.0
          %563 = vmatmul.mubr.f32.gmra.mrb[0].mxu0 %v426
          %v564 = vpop.f32.mrb[0].mxu0
          %v565 = vadd.f32 0.0, %v564
          %v566 = vpop.f32.mrb[0].mxu0
          %v567 = vadd.f32 0.0, %v566
          %568 = vmatprep.mubr.f32.mxu0 0.0
          %569 = vmatmul.mubr.f32.gmra.mrb[0].mxu0 %v429
          %v570 = vpop.f32.mrb[0].mxu0
          %v571 = vadd.f32 0.0, %v570
          %v572 = vpop.f32.mrb[0].mxu0
          %v573 = vadd.f32 0.0, %v572
          %574 = vmatprep.mubr.f32.mxu0 0.0
          %575 = vmatmul.mubr.f32.gmra.mrb[0].mxu0 %v432
          %v576 = vpop.f32.mrb[0].mxu0
          %v577 = vadd.f32 0.0, %v576
          %v578 = vpop.f32.mrb[0].mxu0
          %v579 = vadd.f32 0.0, %v578
          %580 = vmatprep.mubr.f32.mxu0 0.0
          %581 = vmatmul.mubr.f32.gmra.mrb[0].mxu0 %v435
          %v582 = vpop.f32.mrb[0].mxu0
          %v583 = vadd.f32 0.0, %v582
          %v584 = vpop.f32.mrb[0].mxu0
          %v585 = vadd.f32 0.0, %v584
          %586 = vmatprep.mubr.f32.mxu0 0.0
          %587 = vmatmul.mubr.f32.gmra.mrb[0].mxu0 %v438
          %v588 = vpop.f32.mrb[0].mxu0
          %v589 = vadd.f32 0.0, %v588
          %v590 = vpop.f32.mrb[0].mxu0
          %v591 = vadd.f32 0.0, %v590
          %592 = vmatprep.mubr.f32.mxu0 0.0
          %593 = vmatmul.mubr.f32.gmra.mrb[0].mxu0 %v441
          %v594 = vpop.f32.mrb[0].mxu0
          %v595 = vadd.f32 0.0, %v594
          %v596 = vpop.f32.mrb[0].mxu0
          %v597 = vadd.f32 0.0, %v596
          %598 = vmatprep.mubr.f32.mxu0 0.0
          %599 = vmatmul.mubr.f32.gmra.mrb[0].mxu0 %v444
          %v600 = vpop.f32.mrb[0].mxu0
          %v601 = vadd.f32 0.0, %v600
          %v602 = vpop.f32.mrb[0].mxu0
          %v603 = vadd.f32 0.0, %v602
          %604 = vmatprep.mubr.f32.mxu0 0.0
          %605 = vmatmul.mubr.f32.gmra.mrb[0].mxu0 %v447
          %v606 = vpop.f32.mrb[0].mxu0
          %v607 = vadd.f32 0.0, %v606
          %v608 = vpop.f32.mrb[0].mxu0
          %v609 = vadd.f32 0.0, %v608
          %610 = vmatprep.mubr.f32.mxu0 0.0
          %611 = vmatmul.mubr.f32.gmra.mrb[0].mxu0 %v450
          %v612 = vpop.f32.mrb[0].mxu0
          %v613 = vadd.f32 0.0, %v612
          %v614 = vpop.f32.mrb[0].mxu0
          %v615 = vadd.f32 0.0, %v614
          %616 = vmatprep.mubr.f32.mxu0 0.0
          %617 = vmatmul.mubr.f32.gmra.mrb[0].mxu0 %v453
          %v618 = vpop.f32.mrb[0].mxu0
          %v619 = vadd.f32 0.0, %v618
          %v620 = vpop.f32.mrb[0].mxu0
          %v621 = vadd.f32 0.0, %v620
          %622 = vdwg.mxu0
          %v623 = vmin.f32 %v529, %v531
          %v624 = vmin.f32 %v535, %v537
          %v625 = vmin.f32 %v541, %v543
          %v626 = vmin.f32 %v547, %v549
          %v627 = vmin.f32 %v553, %v555
          %v628 = vmin.f32 %v559, %v561
          %v629 = vmin.f32 %v565, %v567
          %v630 = vmin.f32 %v571, %v573
          %v631 = vmin.f32 %v577, %v579
          %v632 = vmin.f32 %v583, %v585
          %v633 = vmin.f32 %v589, %v591
          %v634 = vmin.f32 %v595, %v597
          %v635 = vmin.f32 %v601, %v603
          %v636 = vmin.f32 %v607, %v609
          %v637 = vmin.f32 %v613, %v615
          %v638 = vmin.f32 %v619, %v621
          %v639 = vld [vmem:[#allocation2] sm:$0xff]
          %v640 = vld [vmem:[#allocation2 + $0x8] sm:$0xff]
          %v641 = vld [vmem:[#allocation2 + $0x10] sm:$0xff]
          %v642 = vld [vmem:[#allocation2 + $0x18] sm:$0xff]
          %v643 = vld [vmem:[#allocation2 + $0x20] sm:$0xff]
          %v644 = vld [vmem:[#allocation2 + $0x28] sm:$0xff]
          %v645 = vld [vmem:[#allocation2 + $0x30] sm:$0xff]
          %v646 = vld [vmem:[#allocation2 + $0x38] sm:$0xff]
          %v647 = vld [vmem:[#allocation2 + $0x40] sm:$0xff]
          %v648 = vld [vmem:[#allocation2 + $0x48] sm:$0xff]
          %v649 = vld [vmem:[#allocation2 + $0x50] sm:$0xff]
          %v650 = vld [vmem:[#allocation2 + $0x58] sm:$0xff]
          %v651 = vld [vmem:[#allocation2 + $0x60] sm:$0xff]
          %v652 = vld [vmem:[#allocation2 + $0x68] sm:$0xff]
          %v653 = vld [vmem:[#allocation2 + $0x70] sm:$0xff]
          %v654 = vld [vmem:[#allocation2 + $0x78] sm:$0xff]
          %v655 = vmin.f32 %v639, %v623
          %v656 = vmin.f32 %v640, %v624
          %v657 = vmin.f32 %v641, %v625
          %v658 = vmin.f32 %v642, %v626
          %v659 = vmin.f32 %v643, %v627
          %v660 = vmin.f32 %v644, %v628
          %v661 = vmin.f32 %v645, %v629
          %v662 = vmin.f32 %v646, %v630
          %v663 = vmin.f32 %v647, %v631
          %v664 = vmin.f32 %v648, %v632
          %v665 = vmin.f32 %v649, %v633
          %v666 = vmin.f32 %v650, %v634
          %v667 = vmin.f32 %v651, %v635
          %v668 = vmin.f32 %v652, %v636
          %v669 = vmin.f32 %v653, %v637
          %v670 = vmin.f32 %v654, %v638
          %671 = vst [vmem:[#allocation2] sm:$0xff] %v655
          %672 = vst [vmem:[#allocation2 + $0x8] sm:$0xff] %v656
          %673 = vst [vmem:[#allocation2 + $0x10] sm:$0xff] %v657
          %674 = vst [vmem:[#allocation2 + $0x18] sm:$0xff] %v658
          %675 = vst [vmem:[#allocation2 + $0x20] sm:$0xff] %v659
          %676 = vst [vmem:[#allocation2 + $0x28] sm:$0xff] %v660
          %677 = vst [vmem:[#allocation2 + $0x30] sm:$0xff] %v661
          %678 = vst [vmem:[#allocation2 + $0x38] sm:$0xff] %v662
          %679 = vst [vmem:[#allocation2 + $0x40] sm:$0xff] %v663
          %680 = vst [vmem:[#allocation2 + $0x48] sm:$0xff] %v664
          %681 = vst [vmem:[#allocation2 + $0x50] sm:$0xff] %v665
          %682 = vst [vmem:[#allocation2 + $0x58] sm:$0xff] %v666
          %683 = vst [vmem:[#allocation2 + $0x60] sm:$0xff] %v667
          %684 = vst [vmem:[#allocation2 + $0x68] sm:$0xff] %v668
          %685 = vst [vmem:[#allocation2 + $0x70] sm:$0xff] %v669
          %686 = vst [vmem:[#allocation2 + $0x78] sm:$0xff] %v670
          %v687 = vmin.f32 %v529, %v535
          %v688 = vmin.f32 %v531, %v537
          %v689 = vmin.f32 %v687, %v541
          %v690 = vmin.f32 %v688, %v543
          %v691 = vmin.f32 %v689, %v547
          %v692 = vmin.f32 %v690, %v549
          %v693 = vmin.f32 %v691, %v553
          %v694 = vmin.f32 %v692, %v555
          %v695 = vmin.f32 %v693, %v559
          %v696 = vmin.f32 %v694, %v561
          %v697 = vmin.f32 %v695, %v565
          %v698 = vmin.f32 %v696, %v567
          %v699 = vmin.f32 %v697, %v571
          %v700 = vmin.f32 %v698, %v573
          %v701 = vmin.f32 %v699, %v577
          %v702 = vmin.f32 %v700, %v579
          %v703 = vmin.f32 %v701, %v583
          %v704 = vmin.f32 %v702, %v585
          %v705 = vmin.f32 %v703, %v589
          %v706 = vmin.f32 %v704, %v591
          %v707 = vmin.f32 %v705, %v595
          %v708 = vmin.f32 %v706, %v597
          %v709 = vmin.f32 %v707, %v601
          %v710 = vmin.f32 %v708, %v603
          %v711 = vmin.f32 %v709, %v607
          %v712 = vmin.f32 %v710, %v609
          %v713 = vmin.f32 %v711, %v613
          %v714 = vmin.f32 %v712, %v615
          %v715 = vmin.f32 %v713, %v619
          %v716 = vmin.f32 %v714, %v621
          %s717 = smul.addr %s368, 8
          %s718 = scalar_lea.vmem [#allocation3], %s717
          %v719 = vld [vmem:[%s718] sm:$0xff]
          %v720 = vld [vmem:[%s718 + $0x8] sm:$0xff]
          %v721 = vmin.f32 %v719, %v715
          %v722 = vmin.f32 %v720, %v716
          %723 = vst [vmem:[%s718] sm:$0xff] %v721
          %724 = vst [vmem:[%s718 + $0x8] sm:$0xff] %v722
        $region37: #{tpu_custom_call.1} parent=27 // loop_footer
          %s366 = sadd.s32 1, %s362
        $region38: #{tpu_custom_call.1} parent=27 // loop_footer_branch
          %361 = sbr.rel target = $region34
        $region39: #{tpu_custom_call.1} parent=27 // loop_exit
          _
        %v725 = vld [vmem:[#allocation2] sm:$0xff]
        %v726 = vld [vmem:[#allocation2 + $0x8] sm:$0xff]
        %v727 = vld [vmem:[#allocation2 + $0x10] sm:$0xff]
        %v728 = vld [vmem:[#allocation2 + $0x18] sm:$0xff]
        %v729 = vld [vmem:[#allocation2 + $0x20] sm:$0xff]
        %v730 = vld [vmem:[#allocation2 + $0x28] sm:$0xff]
        %v731 = vld [vmem:[#allocation2 + $0x30] sm:$0xff]
        %v732 = vld [vmem:[#allocation2 + $0x38] sm:$0xff]
        %v733 = vld [vmem:[#allocation2 + $0x40] sm:$0xff]
        %v734 = vld [vmem:[#allocation2 + $0x48] sm:$0xff]
        %v735 = vld [vmem:[#allocation2 + $0x50] sm:$0xff]
        %v736 = vld [vmem:[#allocation2 + $0x58] sm:$0xff]
        %v737 = vld [vmem:[#allocation2 + $0x60] sm:$0xff]
        %v738 = vld [vmem:[#allocation2 + $0x68] sm:$0xff]
        %v739 = vld [vmem:[#allocation2 + $0x70] sm:$0xff]
        %v740 = vld [vmem:[#allocation2 + $0x78] sm:$0xff]
        %741 = vmin.xlane.f32.xlu0 %v725
        %v742 = vpop.xlane.xlu0 %741
        %743 = vmin.xlane.f32.xlu0 %v726
        %v744 = vpop.xlane.xlu0 %743
        %745 = vmin.xlane.f32.xlu0 %v727
        %v746 = vpop.xlane.xlu0 %745
        %747 = vmin.xlane.f32.xlu0 %v728
        %v748 = vpop.xlane.xlu0 %747
        %749 = vmin.xlane.f32.xlu0 %v729
        %v750 = vpop.xlane.xlu0 %749
        %751 = vmin.xlane.f32.xlu0 %v730
        %v752 = vpop.xlane.xlu0 %751
        %753 = vmin.xlane.f32.xlu0 %v731
        %v754 = vpop.xlane.xlu0 %753
        %755 = vmin.xlane.f32.xlu0 %v732
        %v756 = vpop.xlane.xlu0 %755
        %757 = vmin.xlane.f32.xlu0 %v733
        %v758 = vpop.xlane.xlu0 %757
        %759 = vmin.xlane.f32.xlu0 %v734
        %v760 = vpop.xlane.xlu0 %759
        %761 = vmin.xlane.f32.xlu0 %v735
        %v762 = vpop.xlane.xlu0 %761
        %763 = vmin.xlane.f32.xlu0 %v736
        %v764 = vpop.xlane.xlu0 %763
        %765 = vmin.xlane.f32.xlu0 %v737
        %v766 = vpop.xlane.xlu0 %765
        %767 = vmin.xlane.f32.xlu0 %v738
        %v768 = vpop.xlane.xlu0 %767
        %769 = vmin.xlane.f32.xlu0 %v739
        %v770 = vpop.xlane.xlu0 %769
        %771 = vmin.xlane.f32.xlu0 %v740
        %v772 = vpop.xlane.xlu0 %771
        %v773 = vmax.f32 %v742, 0.0
        %v774 = vmax.f32 %v744, 0.0
        %v775 = vmax.f32 %v746, 0.0
        %v776 = vmax.f32 %v748, 0.0
        %v777 = vmax.f32 %v750, 0.0
        %v778 = vmax.f32 %v752, 0.0
        %v779 = vmax.f32 %v754, 0.0
        %v780 = vmax.f32 %v756, 0.0
        %v781 = vmax.f32 %v758, 0.0
        %v782 = vmax.f32 %v760, 0.0
        %v783 = vmax.f32 %v762, 0.0
        %v784 = vmax.f32 %v764, 0.0
        %v785 = vmax.f32 %v766, 0.0
        %v786 = vmax.f32 %v768, 0.0
        %v787 = vmax.f32 %v770, 0.0
        %v788 = vmax.f32 %v772, 0.0
        %789 = vxpose.xlu0.b32.start [1/16] %v773, 128
        %790 = vxpose.xlu0.b32.cont [2/16] %v774, 128
        %791 = vxpose.xlu0.b32.cont [3/16] %v775, 128
        %792 = vxpose.xlu0.b32.cont [4/16] %v776, 128
        %793 = vxpose.xlu0.b32.cont [5/16] %v777, 128
        %794 = vxpose.xlu0.b32.cont [6/16] %v778, 128
        %795 = vxpose.xlu0.b32.cont [7/16] %v779, 128
        %796 = vxpose.xlu0.b32.cont [8/16] %v780, 128
        %797 = vxpose.xlu0.b32.cont [9/16] %v781, 128
        %798 = vxpose.xlu0.b32.cont [10/16] %v782, 128
        %799 = vxpose.xlu0.b32.cont [11/16] %v783, 128
        %800 = vxpose.xlu0.b32.cont [12/16] %v784, 128
        %801 = vxpose.xlu0.b32.cont [13/16] %v785, 128
        %802 = vxpose.xlu0.b32.cont [14/16] %v786, 128
        %803 = vxpose.xlu0.b32.cont [15/16] %v787, 128
        %804 = vxpose.xlu0.b32.end [16/16] %v788, 128
        %v805 = vpop.trf.xlu0
        %v806 = vpop.trf.xlu0
        %v807 = vpop.trf.xlu0
        %v808 = vpop.trf.xlu0
        %v809 = vpop.trf.xlu0
        %v810 = vpop.trf.xlu0
        %v811 = vpop.trf.xlu0
        %v812 = vpop.trf.xlu0
        %v813 = vpop.trf.xlu0
        %v814 = vpop.trf.xlu0
        %v815 = vpop.trf.xlu0
        %v816 = vpop.trf.xlu0
        %v817 = vpop.trf.xlu0
        %v818 = vpop.trf.xlu0
        %v819 = vpop.trf.xlu0
        %v820 = vpop.trf.xlu0
        %v821 = vadd.f32 %v805, 1e-08
        %v822 = vrsqrt.pop %v821
        %v823 = vmul.f32 %v821, %v822
        %vm824 = vcmp.eq.f32.partialorder %v821, inf
        %v825 = vsel %vm824, %v821, %v823
        %vm826 = vcmp.eq.f32.partialorder %v821, 0.0
        %v827 = vand.u32 %v821, 2147483648
        %v828 = vsel %vm826, %v827, %v825
        %829 = vst [vmem:[%s226] sm:$0x1] %v828
        %p830 = scmp.eq.s32.totalorder %s28, 2
        // Predicated region
        $region40: #{tpu_custom_call.1} parent=27 // pred_check
          %p831 = pneg %p830
        $region41: #{tpu_custom_call.1} parent=27 // pred_check_branch
          %833 = sbr.rel (%p831) target = $region43
        $region42: #{tpu_custom_call.1} parent=27 // pred_region
          %v834 = vld [vmem:[#allocation3] sm:$0xff]
          %v835 = vld [vmem:[#allocation3 + $0x8] sm:$0xff]
          %v836 = vld [vmem:[#allocation3 + $0x10] sm:$0xff]
          %v837 = vld [vmem:[#allocation3 + $0x18] sm:$0xff]
          %v838 = vrot.slane %v834, 4
          %v839 = vmin.f32 %v834, %v838
          %v840 = vrot.slane %v839, 2
          %v841 = vmin.f32 %v839, %v840
          %v842 = vrot.slane %v841, 1
          %v843 = vmin.f32 %v841, %v842
          %v844 = vrot.slane %v835, 4
          %v845 = vmin.f32 %v835, %v844
          %v846 = vrot.slane %v845, 2
          %v847 = vmin.f32 %v845, %v846
          %v848 = vrot.slane %v847, 1
          %v849 = vmin.f32 %v847, %v848
          %v850 = vrot.slane %v836, 4
          %v851 = vmin.f32 %v836, %v850
          %v852 = vrot.slane %v851, 2
          %v853 = vmin.f32 %v851, %v852
          %v854 = vrot.slane %v853, 1
          %v855 = vmin.f32 %v853, %v854
          %v856 = vrot.slane %v837, 4
          %v857 = vmin.f32 %v837, %v856
          %v858 = vrot.slane %v857, 2
          %v859 = vmin.f32 %v857, %v858
          %v860 = vrot.slane %v859, 1
          %v861 = vmin.f32 %v859, %v860
          %v862 = vmax.f32 %v843, 0.0
          %v863 = vmax.f32 %v849, 0.0
          %v864 = vmax.f32 %v855, 0.0
          %v865 = vmax.f32 %v861, 0.0
          %v866 = vadd.f32 %v862, 1e-08
          %v867 = vadd.f32 %v863, 1e-08
          %v868 = vadd.f32 %v864, 1e-08
          %v869 = vadd.f32 %v865, 1e-08
          %v870 = vrsqrt.pop %v866
          %v871 = vmul.f32 %v866, %v870
          %vm872 = vcmp.eq.f32.partialorder %v866, inf
          %v873 = vsel %vm872, %v866, %v871
          %vm874 = vcmp.eq.f32.partialorder %v866, 0.0
          %v875 = vand.u32 %v866, 2147483648
          %v876 = vsel %vm874, %v875, %v873
          %v877 = vrsqrt.pop %v867
          %v878 = vmul.f32 %v867, %v877
          %vm879 = vcmp.eq.f32.partialorder %v867, inf
          %v880 = vsel %vm879, %v867, %v878
          %vm881 = vcmp.eq.f32.partialorder %v867, 0.0
          %v882 = vand.u32 %v867, 2147483648
          %v883 = vsel %vm881, %v882, %v880
          %v884 = vrsqrt.pop %v868
          %v885 = vmul.f32 %v868, %v884
          %vm886 = vcmp.eq.f32.partialorder %v868, inf
          %v887 = vsel %vm886, %v868, %v885
          %vm888 = vcmp.eq.f32.partialorder %v868, 0.0
          %v889 = vand.u32 %v868, 2147483648
          %v890 = vsel %vm888, %v889, %v887
          %v891 = vrsqrt.pop %v869
          %v892 = vmul.f32 %v869, %v891
          %vm893 = vcmp.eq.f32.partialorder %v869, inf
          %v894 = vsel %vm893, %v869, %v892
          %vm895 = vcmp.eq.f32.partialorder %v869, 0.0
          %v896 = vand.u32 %v869, 2147483648
          %v897 = vsel %vm895, %v896, %v894
          %v902 = vcombine.low %v876, %v883
          %v903 = vcombine.low %v890, %v897
          %v905 = vunpack.c.l.s4 1966171168
          %v906 = vunpack.c.0.s8 %v905
          %v907 = vlaneseq
          %v908 = vshrl.u32 %v907, 7
          %v909 = vsub.s32 %v906, %v908
          %v910 = vrot.slane %v902, %v909
          %v912 = vunpack.c.l.s4 1966171168
          %v913 = vunpack.c.0.s8 %v912
          %v914 = vlaneseq
          %v915 = vshrl.u32 %v914, 7
          %v916 = vsub.s32 %v913, %v915
          %v917 = vrot.slane %v903, %v916
          %v918 = vcombine.low %v910, %v917
          %v920 = vunpack.c.l.s4 1966171168
          %v921 = vunpack.c.0.s8 %v920
          %v922 = vlaneseq
          %v923 = vshrl.u32 %v922, 7
          %v924 = vsub.s32 %v921, %v923
          %v925 = vrot.slane %v918, %v924
          %v927 = vlaneseq
          %vm928 = vcmp.ge.s32.totalorder %v927, 0
          %vm929 = vcmp.lt.s32.totalorder %v927, 512
          %vm930 = vmand %vm928, %vm929
          %931 = vst.msk [vmem:[%s233] sm:$0xf] %vm930, %v925
        $region43: #{tpu_custom_call.1} parent=27 // pred_fallthru
          _
        %s932 = sand.u32 %s112, 1
        %s933 = scalar_lea.sflag [#allocation6], %s932
        %s934 = sand.u32 %s112, 1
        %s935 = scalar_lea.vmem [#allocation5], %s934
        %s936 = sand.u32 %s140, 1
        %s937 = scalar_lea.sflag [#allocation8], %s936
        %s938 = sand.u32 %s140, 1
        %s939 = smul.addr %s938, 4
        %s940 = scalar_lea.vmem [#allocation7], %s939
        // Predicated region
        $region44: #{tpu_custom_call.1} parent=27 // pred_check
          %p941 = pneg %p122
        $region45: #{tpu_custom_call.1} parent=27 // pred_check_branch
          %943 = sbr.rel (%p941) target = $region47
        $region46: #{tpu_custom_call.1} parent=27 // pred_region
          %s944 = smul.u32 %s27, 3
          %s945 = sadd.s32 %s944, %s28
          %s947 = ssub.s32 16, 16
          %948 = vsyncadd %s933, %s947
          %s949 = smul.addr %s26, 3
          %s950 = sadd.s32 %s945, %s949
          %s951 = smul.addr %s950, 16
          %s952 = scalar_lea.hbm %s2, %s951
          %s954 = sshll.u32 %s935, 4
          %s955 = int_to_ptr.vmem [resolvable:$true] %s954
          %957 = dma.vmem_to_hbm [thread:$0]  %s955, 16, %s952, %s933
        $region47: #{tpu_custom_call.1} parent=27 // pred_fallthru
          _
        // Predicated region
        $region48: #{tpu_custom_call.1} parent=27 // pred_check
          %p958 = pneg %p150
        $region49: #{tpu_custom_call.1} parent=27 // pred_check_branch
          %960 = sbr.rel (%p958) target = $region51
        $region50: #{tpu_custom_call.1} parent=27 // pred_region
          %s961 = sadd.s32 %s26, %s27
          %s963 = ssub.s32 64, 64
          %964 = vsyncadd %s937, %s963
          %s965 = smul.addr %s961, 4
          %s966 = smul.addr %s965, 16
          %s967 = scalar_lea.hbm %s3, %s966
          %s969 = sshll.u32 %s940, 4
          %s970 = int_to_ptr.vmem [resolvable:$true] %s969
          %972 = dma.vmem_to_hbm [thread:$0]  %s970, 64, %s967, %s937
        $region51: #{tpu_custom_call.1} parent=27 // pred_fallthru
          _
      $region28: #{tpu_custom_call.1} parent=5 // pred_fallthru
        _
      %p973 = scmp.le.s32.totalorder 2, %s16
      // Predicated region
      $region52: #{tpu_custom_call.1} parent=5 // pred_check
        %p974 = pneg %p973
      $region53: #{tpu_custom_call.1} parent=5 // pred_check_branch
        %976 = sbr.rel (%p974) target = $region55
      $region54: #{tpu_custom_call.1} parent=5 // pred_region
        %s977 = ssub.s32 %s16, 2
        // Predicated region
        $region56: #{tpu_custom_call.1} parent=54 // pred_check
          %p978 = pneg %p128
        $region57: #{tpu_custom_call.1} parent=54 // pred_check_branch
          %980 = sbr.rel (%p978) target = $region59
        $region58: #{tpu_custom_call.1} parent=54 // pred_region
          %s981 = sand.u32 %s113, 1
          %s982 = scalar_lea.sflag [#allocation6], %s981
          %s983 = sand.u32 %s113, 1
          %s984 = scalar_lea.vmem [#allocation5], %s983
          %985 = dma.done %s982, 16
        $region59: #{tpu_custom_call.1} parent=54 // pred_fallthru
          _
        // Predicated region
        $region60: #{tpu_custom_call.1} parent=54 // pred_check
          %p986 = pneg %p156
        $region61: #{tpu_custom_call.1} parent=54 // pred_check_branch
          %988 = sbr.rel (%p986) target = $region63
        $region62: #{tpu_custom_call.1} parent=54 // pred_region
          %s989 = sand.u32 %s141, 1
          %s990 = scalar_lea.sflag [#allocation8], %s989
          %s991 = sand.u32 %s141, 1
          %s992 = smul.addr %s991, 4
          %s993 = scalar_lea.vmem [#allocation7], %s992
          %994 = dma.done %s990, 64
        $region63: #{tpu_custom_call.1} parent=54 // pred_fallthru
          _
      $region55: #{tpu_custom_call.1} parent=5 // pred_fallthru
        _
    $region6: #{tpu_custom_call.1} parent=1 // loop_footer
      %s20 = sadd.s32 1, %s16
    $region7: #{tpu_custom_call.1} parent=1 // loop_footer_branch
      %15 = sbr.rel target = $region3
    $region8: #{tpu_custom_call.1} parent=1 // loop_exit
      _
    %995 = vsyncpa [#allocation6], 1
    %s996 = scalar_lea.sflag [#allocation6], 1
    %997 = vsyncpa %s996, 1
    %998 = vsyncpa [#allocation8], 1
    %s999 = scalar_lea.sflag [#allocation8], 1
    %1000 = vsyncpa %s999, 1

</llo_original>
